<compile_context>
chip_gen: v5e
topology: v5e:2x2
jax: 0.10.0
libtpu: 0.0.40
codegen_flags: <defaults>
</compile_context>

<pallas_src>
import functools

import jax
import jax.numpy as jnp
from jax import lax
from jax.experimental import pallas as pl
from jax.experimental.pallas import tpu as pltpu


# ----------------------------------------------------------------------------
# Tiling helper
# ----------------------------------------------------------------------------
def _pick_tile(dim, target, align):
    """Largest multiple of `align` that divides `dim` and is <= target.

    Returns `dim` itself when dim <= target (full extent) or when no aligned
    divisor exists (fallback: single block).  Divisibility matters for the
    reduction axes (K of the matmul, Nk of attention) where out-of-bounds
    padding would corrupt valid outputs.
    """
    if dim <= target:
        return dim
    t = (target // align) * align
    while t >= align:
        if dim % t == 0:
            return t
        t -= align
    return dim


# ----------------------------------------------------------------------------
# Tiled linear projection kernels (y = x @ w [+ b])
# ----------------------------------------------------------------------------
def _matmul_kernel(x_ref, w_ref, o_ref, acc_ref):
    @pl.when(pl.program_id(2) == 0)
    def _():
        acc_ref[...] = jnp.zeros_like(acc_ref)

    acc_ref[...] += jnp.dot(x_ref[...], w_ref[...],
                            preferred_element_type=jnp.float32)

    @pl.when(pl.program_id(2) == pl.num_programs(2) - 1)
    def _():
        o_ref[...] = acc_ref[...].astype(o_ref.dtype)


def _matmul_bias_kernel(x_ref, w_ref, b_ref, o_ref, acc_ref):
    @pl.when(pl.program_id(2) == 0)
    def _():
        acc_ref[...] = jnp.zeros_like(acc_ref)

    acc_ref[...] += jnp.dot(x_ref[...], w_ref[...],
                            preferred_element_type=jnp.float32)

    @pl.when(pl.program_id(2) == pl.num_programs(2) - 1)
    def _():
        o_ref[...] = (acc_ref[...] + b_ref[...].astype(jnp.float32)
                      ).astype(o_ref.dtype)


def linear_pallas(x2d, w_t, bias=None, *, tm=256, tn=256, tk=512):
    """y = x2d @ w_t (+ bias), tiled over (M, Nout, K) with a K-reduction
    accumulator in VMEM.  bias=None skips the bias input entirely."""
    M, K = x2d.shape
    Nout = w_t.shape[1]
    tm = _pick_tile(M, tm, 8)
    tn = _pick_tile(Nout, tn, 128)
    tk = _pick_tile(K, tk, 128)          # must divide K (reduction axis)
    grid = (pl.cdiv(M, tm), pl.cdiv(Nout, tn), K // tk)

    in_specs = [
        pl.BlockSpec((tm, tk), lambda i, j, k: (i, k)),
        pl.BlockSpec((tk, tn), lambda i, j, k: (k, j)),
    ]
    args = (x2d, w_t)
    kernel = _matmul_kernel
    if bias is not None:
        in_specs.append(pl.BlockSpec((1, tn), lambda i, j, k: (0, j)))
        args = (x2d, w_t, bias.reshape(1, Nout))
        kernel = _matmul_bias_kernel

    itemsize = x2d.dtype.itemsize
    cost = pl.CostEstimate(
        flops=2 * M * Nout * K,
        transcendentals=0,
        bytes_accessed=(x2d.size + w_t.size + M * Nout) * itemsize,
    )
    return pl.pallas_call(
        kernel,
        out_shape=jax.ShapeDtypeStruct((M, Nout), x2d.dtype),
        grid_spec=pltpu.PrefetchScalarGridSpec(
            num_scalar_prefetch=0,
            grid=grid,
            in_specs=in_specs,
            out_specs=pl.BlockSpec((tm, tn), lambda i, j, k: (i, j)),
            scratch_shapes=[pltpu.VMEM((tm, tn), jnp.float32)],
        ),
        compiler_params=pltpu.CompilerParams(
            dimension_semantics=("parallel", "parallel", "arbitrary"),
            vmem_limit_bytes=32 * 1024 * 1024,
        ),
        cost_estimate=cost,
    )(*args)


# ----------------------------------------------------------------------------
# Flash-style attention kernel (all heads of one batch element per instance)
# ----------------------------------------------------------------------------
def _flash_kernel(scale, q_ref, k_ref, v_ref, o_ref, m_sc, l_sc, acc_sc):
    # q_ref: (1, H, tq, D), k_ref/v_ref: (1, H, tkv, D), o_ref: (1, H, tq, D)
    # scratch: m_sc/l_sc (H, tq, 1) f32, acc_sc (H, tq, D) f32
    kv = pl.program_id(2)

    @pl.when(kv == 0)
    def _():
        m_sc[...] = jnp.full_like(m_sc, -jnp.inf)
        l_sc[...] = jnp.zeros_like(l_sc)
        acc_sc[...] = jnp.zeros_like(acc_sc)

    # Fold the softmax scale into q (tq*H*D elements) instead of the scores.
    q = q_ref[0] * scale                 # (H, tq, D), native dtype
    k = k_ref[0]                         # (H, tkv, D)
    v = v_ref[0]                         # (H, tkv, D)

    # scores: contract D (last dims), batch over heads -> (H, tq, tkv), f32 acc
    s = lax.dot_general(q, k, (((2,), (2,)), ((0,), (0,))),
                        preferred_element_type=jnp.float32)

    m_prev = m_sc[...]
    m_new = jnp.maximum(m_prev, jnp.max(s, axis=-1, keepdims=True))
    alpha = jnp.exp(m_prev - m_new)
    p = jnp.exp(s - m_new)
    l_sc[...] = alpha * l_sc[...] + jnp.sum(p, axis=-1, keepdims=True)

    # (H, tq, tkv) @ (H, tkv, D) -> (H, tq, D)
    pv = lax.dot_general(p.astype(v.dtype), v, (((2,), (1,)), ((0,), (0,))),
                         preferred_element_type=jnp.float32)
    acc_sc[...] = alpha * acc_sc[...] + pv
    m_sc[...] = m_new

    @pl.when(kv == pl.num_programs(2) - 1)
    def _():
        inv_l = pl.reciprocal(l_sc[...], approx=True)
        o_ref[0] = (acc_sc[...] * inv_l).astype(o_ref.dtype)


def flash_attention_pallas(q, k, v, scale, *, tq=128, tkv=128):
    """Online-softmax attention.  q: (B, H, Nq, D), k/v: (B, H, Nk, D)."""
    B, H, Nq, D = q.shape
    Nk = k.shape[2]
    tq = _pick_tile(Nq, tq, 8)
    tkv = _pick_tile(Nk, tkv, 8)         # must divide Nk (softmax reduction)
    grid = (B, Nq // tq, Nk // tkv)

    itemsize = q.dtype.itemsize
    cost = pl.CostEstimate(
        flops=4 * B * H * Nq * Nk * D,
        transcendentals=B * H * Nq * Nk,
        bytes_accessed=(2 * q.size + k.size + v.size) * itemsize,
    )
    kern = functools.partial(_flash_kernel, scale)
    return pl.pallas_call(
        kern,
        out_shape=jax.ShapeDtypeStruct((B, H, Nq, D), q.dtype),
        grid_spec=pltpu.PrefetchScalarGridSpec(
            num_scalar_prefetch=0,
            grid=grid,
            in_specs=[
                pl.BlockSpec((1, H, tq, D), lambda b, i, j: (b, 0, i, 0)),
                pl.BlockSpec((1, H, tkv, D), lambda b, i, j: (b, 0, j, 0)),
                pl.BlockSpec((1, H, tkv, D), lambda b, i, j: (b, 0, j, 0)),
            ],
            out_specs=pl.BlockSpec((1, H, tq, D), lambda b, i, j: (b, 0, i, 0)),
            scratch_shapes=[
                pltpu.VMEM((H, tq, 1), jnp.float32),   # running max
                pltpu.VMEM((H, tq, 1), jnp.float32),   # running sum
                pltpu.VMEM((H, tq, D), jnp.float32),   # running output acc
            ],
        ),
        compiler_params=pltpu.CompilerParams(
            dimension_semantics=("parallel", "parallel", "arbitrary"),
            vmem_limit_bytes=32 * 1024 * 1024,
        ),
        cost_estimate=cost,
    )(q, k, v)


# ----------------------------------------------------------------------------
# Module wrapper (parameter setup + glue reshapes in plain JAX)
# ----------------------------------------------------------------------------
class AttentionPallasModule:
    def __init__(self, dim, heads=8, dim_head=64, dropout=0.0, selfatt=True,
                 kv_dim=None, key=jax.random.PRNGKey(0)):
        inner_dim = dim_head * heads
        self.heads = heads
        self.dim_head = dim_head
        self.dim = dim
        self.scale = dim_head ** (-0.5)
        self.selfatt = selfatt
        self.project_out = not (heads == 1 and dim_head == dim)
        # dropout=0.0 / eval mode -> identity; no kernel needed.

        k1, k2, k3, k4 = jax.random.split(key, 4)
        init = lambda k, shape: (0.02 * jax.random.normal(k, shape)).astype(jnp.float32)
        if selfatt:
            # PyTorch Linear weight is (out, in); store transposed for x @ W^T.
            # bias=False in the reference -> no bias tensor at all.
            self.w_qkv_t = init(k1, (inner_dim * 3, dim)).T
        else:
            assert kv_dim is not None
            self.w_q_t = init(k1, (inner_dim, dim)).T        # bias=False
            self.w_kv_t = init(k2, (inner_dim * 2, kv_dim)).T  # bias=False
        if self.project_out:
            self.w_out_t = init(k3, (dim, inner_dim)).T
            self.b_out = init(k4, (dim,)).reshape(dim)

    def _split_heads(self, t, b, n):
        # TODO(synk): folding this head split / merge into the attention
        # BlockSpec index_maps (lane-dense (tq, H*D) output) would remove two
        # HBM round trips, but requires in-kernel lane-splitting reshapes that
        # are not reliably supported by Mosaic for dim_head < 128.
        h, d = self.heads, self.dim_head
        return t.reshape(b, n, h, d).transpose(0, 2, 1, 3)   # (b, h, n, d)

    def __call__(self, x, z=None):
        b, n, dim = x.shape
        inner = self.heads * self.dim_head
        if z is None:
            qkv = linear_pallas(x.reshape(b * n, dim), self.w_qkv_t)
            q2d, k2d, v2d = jnp.split(qkv, 3, axis=-1)
            n_kv = n
        else:
            _, n_kv, kv_dim = z.shape
            q2d = linear_pallas(x.reshape(b * n, dim), self.w_q_t)
            kv = linear_pallas(z.reshape(b * n_kv, kv_dim), self.w_kv_t)
            k2d, v2d = jnp.split(kv, 2, axis=-1)

        q = self._split_heads(q2d, b, n)        # (b, h, n,   d)
        k = self._split_heads(k2d, b, n_kv)     # (b, h, nkv, d)
        v = self._split_heads(v2d, b, n_kv)

        out = flash_attention_pallas(q, k, v, self.scale)     # (b, h, n, d)
        out = out.transpose(0, 2, 1, 3).reshape(b, n, inner)  # b n (h d)

        if self.project_out:
            out = linear_pallas(out.reshape(b * n, inner), self.w_out_t,
                                self.b_out)
            out = out.reshape(b, n, self.dim)
        return out


# ----------------------------------------------------------------------------
# Pure-JAX reference (mirrors the PyTorch forward) for verification
# ----------------------------------------------------------------------------
def reference_forward(mod, x, z=None):
    b, n, _ = x.shape
    h, d = mod.heads, mod.dim_head
    if z is None:
        qkv = x @ mod.w_qkv_t
        q, k, v = jnp.split(qkv, 3, axis=-1)
        n_kv = n
    else:
        _, n_kv, _ = z.shape
        q = x @ mod.w_q_t
        kv = z @ mod.w_kv_t
        k, v = jnp.split(kv, 2, axis=-1)
    to_heads = lambda t, m: t.reshape(b, m, h, d).transpose(0, 2, 1, 3)
    q, k, v = to_heads(q, n), to_heads(k, n_kv), to_heads(v, n_kv)
    dots = jnp.einsum("bhnd,bhmd->bhnm", q, k) * mod.scale
    attn = jax.nn.softmax(dots, axis=-1)
    out = jnp.einsum("bhnm,bhmd->bhnd", attn, v)
    out = out.transpose(0, 2, 1, 3).reshape(b, n, h * d)
    if mod.project_out:
        out = out @ mod.w_out_t + mod.b_out
    return out


if __name__ == "__main__":
    # Small-but-nontrivial shapes: batch=2, seq=256 (exercises the multi-block
    # flash path: 2 q-blocks x 2 kv-blocks), dim=32, heads=2, dim_head=16.
    B, N, DIM, HEADS, DIM_HEAD = 2, 256, 32, 2, 16

    key = jax.random.PRNGKey(0)
    kx, kp = jax.random.split(key)
    x = jax.random.normal(kx, (B, N, DIM), dtype=jnp.float32)

    mod = AttentionPallasModule(DIM, heads=HEADS, dim_head=DIM_HEAD,
                                dropout=0.0, selfatt=True, key=kp)

    out = mod(x)
    jax.block_until_ready(out)

    ref = reference_forward(mod, x)
    assert out.shape == (B, N, DIM)
    # Slightly relaxed tolerance: online-softmax reassociation + the EUP
    # approx reciprocal used for the softmax normalization.
    assert jnp.allclose(out, ref, atol=2e-3, rtol=2e-3), "mismatch vs reference"

    print("KERNEL_OK")
</pallas_src>

<mosaic_0001>
module attributes {stable_mosaic.version = 11 : i64} {
  func.func @_matmul_kernel(%arg0: i32, %arg1: i32, %arg2: i32, %arg3: memref<256x32xf32, #tpu.memory_space<vmem>>, %arg4: memref<32x96xf32, #tpu.memory_space<vmem>>, %arg5: memref<256x96xf32, #tpu.memory_space<vmem>>, %arg6: memref<256x96xf32, #tpu.memory_space<vmem>>) attributes {dimension_semantics = [#tpu.dimension_semantics<parallel>, #tpu.dimension_semantics<parallel>, #tpu.dimension_semantics<arbitrary>], iteration_bounds = array<i64: 2, 1, 1>, scalar_prefetch = 0 : i64, scratch_operands = 1 : i64, tpu.core_type = #tpu.core_type<tc>, window_params = [{transform_indices = @transform_0, window_bounds = array<i64: 256, 32>}, {transform_indices = @transform_1, window_bounds = array<i64: 32, 96>}, {transform_indices = @transform_2, window_bounds = array<i64: 256, 96>}]} {
    %c0_i32 = arith.constant 0 : i32
    %0 = arith.cmpi eq, %arg2, %c0_i32 : i32
    %1 = arith.extui %0 : i1 to i32
    %c0_i32_0 = arith.constant 0 : i32
    %2 = arith.cmpi ne, %1, %c0_i32_0 : i32
    scf.if %2 {
      %cst_10 = arith.constant 0.000000e+00 : f32
      %12 = vector.broadcast %cst_10 : f32 to vector<256x96xf32>
      %c0_11 = arith.constant 0 : index
      %c0_12 = arith.constant 0 : index
      %13 = vector.load %arg6[%c0_11, %c0_12] : memref<256x96xf32, #tpu.memory_space<vmem>>, vector<256x96xf32>
      tpu.vector_store %arg6[%c0_11, %c0_12], %12 {strides = array<i32>} : memref<256x96xf32, #tpu.memory_space<vmem>>, vector<256x96xf32>,
    } else {
    }
    %c0 = arith.constant 0 : index
    %c0_1 = arith.constant 0 : index
    %3 = vector.load %arg6[%c0, %c0_1] : memref<256x96xf32, #tpu.memory_space<vmem>>, vector<256x96xf32>
    %c0_2 = arith.constant 0 : index
    %c0_3 = arith.constant 0 : index
    %4 = vector.load %arg3[%c0_2, %c0_3] : memref<256x32xf32, #tpu.memory_space<vmem>>, vector<256x32xf32>
    %c0_4 = arith.constant 0 : index
    %c0_5 = arith.constant 0 : index
    %5 = vector.load %arg4[%c0_4, %c0_5] : memref<32x96xf32, #tpu.memory_space<vmem>>, vector<32x96xf32>
    %cst = arith.constant dense<0.000000e+00> : vector<256x96xf32>
    %6 = tpu.matmul %4, %5, %cst {dimension_numbers = #tpu.dot_dimension_numbers<[1], [0], [0], [1], [0, 0, 1, 1], [], []>} : vector<256x32xf32>, vector<32x96xf32>, vector<256x96xf32> -> vector<256x96xf32>
    %7 = arith.addf %3, %6 : vector<256x96xf32>
    %c0_6 = arith.constant 0 : index
    %c0_7 = arith.constant 0 : index
    %8 = vector.load %arg6[%c0_6, %c0_7] : memref<256x96xf32, #tpu.memory_space<vmem>>, vector<256x96xf32>
    tpu.vector_store %arg6[%c0_6, %c0_7], %7 {strides = array<i32>} : memref<256x96xf32, #tpu.memory_space<vmem>>, vector<256x96xf32>,
    %c0_i32_8 = arith.constant 0 : i32
    %9 = arith.cmpi eq, %arg2, %c0_i32_8 : i32
    %10 = arith.extui %9 : i1 to i32
    %c0_i32_9 = arith.constant 0 : i32
    %11 = arith.cmpi ne, %10, %c0_i32_9 : i32
    scf.if %11 {
      %c0_10 = arith.constant 0 : index
      %c0_11 = arith.constant 0 : index
      %12 = vector.load %arg6[%c0_10, %c0_11] : memref<256x96xf32, #tpu.memory_space<vmem>>, vector<256x96xf32>
      %c0_12 = arith.constant 0 : index
      %c0_13 = arith.constant 0 : index
      %13 = vector.load %arg5[%c0_12, %c0_13] : memref<256x96xf32, #tpu.memory_space<vmem>>, vector<256x96xf32>
      tpu.vector_store %arg5[%c0_12, %c0_13], %12 {strides = array<i32>} : memref<256x96xf32, #tpu.memory_space<vmem>>, vector<256x96xf32>,
    } else {
    }
    return
  }
  func.func @transform_0(%arg0: i32, %arg1: i32, %arg2: i32) -> (i32, i32) {
    %c0_i32 = arith.constant 0 : i32
    return %arg0, %arg2 : i32, i32
  }
  func.func @transform_1(%arg0: i32, %arg1: i32, %arg2: i32) -> (i32, i32) {
    %c0_i32 = arith.constant 0 : i32
    return %arg2, %arg1 : i32, i32
  }
  func.func @transform_2(%arg0: i32, %arg1: i32, %arg2: i32) -> (i32, i32) {
    %c0_i32 = arith.constant 0 : i32
    return %arg0, %arg1 : i32, i32
  }
}

</mosaic_0001>

<llo_original>
// kernel: tpu_custom_call.1
$region0: #{tpu_custom_call.1}
  #allocation0 [shape = 'u32[]', space=smem, size = 0x4, offset = 0x4, fixed_abs, tag = 'smem constant byte address 0x4 - core index']
  #allocation1 [shape = 'u32[72,128]{1,0:T(1,128)}', space=vmem, size = 0x9000, scoped, tag = 'internal scratch']
  #allocation2 [shape = 'f32[256,96]{1,0:T(8,128)}', space=vmem, size = 0x20000, scoped, tag = 'scratch operand']
  %s0 = inlined_call_operand.vmem [shape: f32[512,32], index: 0, kind: input, shape index: {}]
  %s1 = inlined_call_operand.vmem [shape: f32[32,96], index: 1, kind: input, shape index: {}]
  %s2 = inlined_call_operand.vmem [shape: f32[512,96], index: 2, kind: output, shape index: {}]
  %s3 = sld [smem:[#allocation0]]
  $region49: #{tpu_custom_call.1} parent=0
    _
  %s5 = ssub.s32 1, %s3
  %s6 = scalar_select 0, %s5, %s3
  loop: start=0, step=1, limit=4
  $region2: #{tpu_custom_call.1} parent=0 // loop_pre_header
    _
  $region3: #{tpu_custom_call.1} parent=0 // loop_header
    %s8 = sphi 0, %s12
    %p9 = scmp.ge.s32.totalorder %s8, 4
    %s15 = sphi 0, %s34
    %s16 = sphi 0, %s30
    %s17 = sphi 0, %s26
    %s18 = sphi 0, %s15
    %s19 = sphi 0, %s16
    %s20 = sphi 0, %s17
    %s21 = sphi 0, %s18
    %s22 = sphi 0, %s19
    %s23 = sphi 0, %s20
    %s39 = sphi 0, %s41
    %s42 = sphi 0, %s39
    %s43 = sphi 0, %s42
    %s59 = sphi 0, %s43
    %s67 = sphi 0, %s69
    %s70 = sphi 0, %s67
    %s71 = sphi 0, %s70
    %s87 = sphi 0, %s71
    %s95 = sphi 0, %s97
    %s98 = sphi 0, %s95
    %s99 = sphi 0, %s98
    %s115 = sphi 0, %s99
  $region4: #{tpu_custom_call.1} parent=0 // loop_header_branch
    %11 = sbr.rel (%p9) target = $region8
  $region5: #{tpu_custom_call.1} parent=0 // loop_body
    %s13 = ssub.s32 %s8, 1
    %s14 = ssub.s32 %s8, 2
    %s24 = sadd.s32 1, %s17
    %p25 = scmp.ge.s32.totalorder %s24, 1
    %s26 = scalar_select %p25, 0, %s24
    %s27 = sadd.s32 1, %s16
    %s28 = scalar_select %p25, %s27, %s16
    %p29 = scmp.ge.s32.totalorder %s28, 1
    %s30 = scalar_select %p29, 0, %s28
    %s31 = sadd.s32 1, %s15
    %s32 = scalar_select %p29, %s31, %s15
    %p33 = scmp.ge.s32.totalorder %s32, 2
    %s34 = scalar_select %p33, 0, %s32
    %s35 = ssub.s32 %s15, %s34
    %s36 = ssub.s32 %s17, %s26
    %s37 = sor.u32 %s35, %s36
    %p38 = scmp.eq.s32.totalorder %s37, 0
    %s40 = sadd.s32 %s39, 1
    %s41 = scalar_select %p38, %s39, %s40
    %p44 = pneg %p38
    %p45 = scmp.eq.s32.totalorder %s8, 1
    %p46 = por %p44, %p45
    %p47 = scmp.ne.s32.totalorder %s39, %s42
    %p48 = scmp.eq.s32.totalorder %s8, 0
    %p49 = por %p47, %p48
    %p50 = scmp.ne.s32.totalorder %s39, %s42
    %p51 = scmp.eq.s32.totalorder %s13, 1
    %p52 = por %p50, %p51
    %p53 = scmp.ne.s32.totalorder %s42, %s43
    %p54 = scmp.eq.s32.totalorder %s13, 0
    %p55 = por %p53, %p54
    %p56 = scmp.ne.s32.totalorder %s42, %s43
    %p57 = scmp.eq.s32.totalorder %s14, 1
    %p58 = por %p56, %p57
    %p60 = scmp.ne.s32.totalorder %s43, %s59
    %p61 = scmp.eq.s32.totalorder %s14, 0
    %p62 = por %p60, %p61
    %s63 = ssub.s32 %s17, %s26
    %s64 = ssub.s32 %s16, %s30
    %s65 = sor.u32 %s63, %s64
    %p66 = scmp.eq.s32.totalorder %s65, 0
    %s68 = sadd.s32 %s67, 1
    %s69 = scalar_select %p66, %s67, %s68
    %p72 = pneg %p66
    %p73 = scmp.eq.s32.totalorder %s8, 1
    %p74 = por %p72, %p73
    %p75 = scmp.ne.s32.totalorder %s67, %s70
    %p76 = scmp.eq.s32.totalorder %s8, 0
    %p77 = por %p75, %p76
    %p78 = scmp.ne.s32.totalorder %s67, %s70
    %p79 = scmp.eq.s32.totalorder %s13, 1
    %p80 = por %p78, %p79
    %p81 = scmp.ne.s32.totalorder %s70, %s71
    %p82 = scmp.eq.s32.totalorder %s13, 0
    %p83 = por %p81, %p82
    %p84 = scmp.ne.s32.totalorder %s70, %s71
    %p85 = scmp.eq.s32.totalorder %s14, 1
    %p86 = por %p84, %p85
    %p88 = scmp.ne.s32.totalorder %s71, %s87
    %p89 = scmp.eq.s32.totalorder %s14, 0
    %p90 = por %p88, %p89
    %s91 = ssub.s32 %s15, %s34
    %s92 = ssub.s32 %s16, %s30
    %s93 = sor.u32 %s91, %s92
    %p94 = scmp.eq.s32.totalorder %s93, 0
    %s96 = sadd.s32 %s95, 1
    %s97 = scalar_select %p94, %s95, %s96
    %p100 = pneg %p94
    %p101 = scmp.eq.s32.totalorder %s8, 1
    %p102 = por %p100, %p101
    %p103 = scmp.ne.s32.totalorder %s95, %s98
    %p104 = scmp.eq.s32.totalorder %s8, 0
    %p105 = por %p103, %p104
    %p106 = scmp.ne.s32.totalorder %s95, %s98
    %p107 = scmp.eq.s32.totalorder %s13, 1
    %p108 = por %p106, %p107
    %p109 = scmp.ne.s32.totalorder %s98, %s99
    %p110 = scmp.eq.s32.totalorder %s13, 0
    %p111 = por %p109, %p110
    %p112 = scmp.ne.s32.totalorder %s98, %s99
    %p113 = scmp.eq.s32.totalorder %s14, 1
    %p114 = por %p112, %p113
    %p116 = scmp.ne.s32.totalorder %s99, %s115
    %p117 = scmp.eq.s32.totalorder %s14, 0
    %p118 = por %p116, %p117
    %p119 = scmp.le.s32.totalorder 1, %s8
    %p120 = scmp.lt.s32.totalorder %s8, 3
    %p121 = pnand %p119, %p120
    %p122 = pneg %p121
    // Predicated region
    $region9: #{tpu_custom_call.1} parent=5 // pred_check
      _
    $region10: #{tpu_custom_call.1} parent=5 // pred_check_branch
      %124 = sbr.rel (%p121) target = $region12
    $region11: #{tpu_custom_call.1} parent=5 // pred_region
      %s125 = ssub.s32 %s8, 1
      // Predicated region
      $region13: #{tpu_custom_call.1} parent=11 // pred_check
        %p126 = pneg %p83
      $region14: #{tpu_custom_call.1} parent=11 // pred_check_branch
        %128 = sbr.rel (%p126) target = $region16
      $region15: #{tpu_custom_call.1} parent=11 // pred_region
        %s129 = smul.u32 4, %s20
        %p130 = scmp.lt.s32.totalorder %s129, 3
        %s131 = scalar_select %p130, %s129, 3
        %p132 = scmp.lt.s32.totalorder %s19, 0
        %s133 = scalar_select %p132, %s19, 0
        %s134 = sadd.s32 %s133, %s131
        %s135 = smul.addr %s134, 8
        %s136 = scalar_lea.vmem %s1, %s135
        %s137 = smul.u32 4, %s20
      $region16: #{tpu_custom_call.1} parent=11 // pred_fallthru
        _
    $region12: #{tpu_custom_call.1} parent=5 // pred_fallthru
      _
    %p138 = scmp.lt.s32.totalorder %s8, 2
    // Predicated region
    $region17: #{tpu_custom_call.1} parent=5 // pred_check
      %p139 = pneg %p138
    $region18: #{tpu_custom_call.1} parent=5 // pred_check_branch
      %141 = sbr.rel (%p139) target = $region20
    $region19: #{tpu_custom_call.1} parent=5 // pred_region
      // Predicated region
      $region21: #{tpu_custom_call.1} parent=19 // pred_check
        %p142 = pneg %p49
      $region22: #{tpu_custom_call.1} parent=19 // pred_check_branch
        %144 = sbr.rel (%p142) target = $region24
      $region23: #{tpu_custom_call.1} parent=19 // pred_region
        %s145 = smul.u32 32, %s15
        %p146 = scmp.lt.s32.totalorder %s145, 63
        %s147 = scalar_select %p146, %s145, 63
        %p148 = scmp.lt.s32.totalorder %s17, 0
        %s149 = scalar_select %p148, %s17, 0
        %s150 = sadd.s32 %s149, %s147
        %s151 = smul.addr %s150, 8
        %s152 = scalar_lea.vmem %s0, %s151
        %s153 = smul.u32 32, %s15
      $region24: #{tpu_custom_call.1} parent=19 // pred_fallthru
        _
    $region20: #{tpu_custom_call.1} parent=5 // pred_fallthru
      _
    %p154 = scmp.le.s32.totalorder 1, %s8
    %p155 = scmp.lt.s32.totalorder %s8, 3
    %p156 = pnand %p154, %p155
    %p157 = pneg %p156
    // Predicated region
    $region25: #{tpu_custom_call.1} parent=5 // pred_check
      _
    $region26: #{tpu_custom_call.1} parent=5 // pred_check_branch
      %159 = sbr.rel (%p156) target = $region28
    $region27: #{tpu_custom_call.1} parent=5 // pred_region
      %s160 = ssub.s32 %s8, 1
      %s161 = smul.u32 32, %s18
      %p162 = scmp.lt.s32.totalorder %s161, 63
      %s163 = scalar_select %p162, %s161, 63
      %p164 = scmp.lt.s32.totalorder %s20, 0
      %s165 = scalar_select %p164, %s20, 0
      %s166 = sadd.s32 %s165, %s163
      %s167 = smul.addr %s166, 8
      %s168 = scalar_lea.vmem %s0, %s167
      %p169 = pneg %p55
      %p170 = pneg %p52
      %s171 = smul.u32 4, %s20
      %p172 = scmp.lt.s32.totalorder %s171, 3
      %s173 = scalar_select %p172, %s171, 3
      %p174 = scmp.lt.s32.totalorder %s19, 0
      %s175 = scalar_select %p174, %s19, 0
      %s176 = sadd.s32 %s175, %s173
      %s177 = smul.addr %s176, 8
      %s178 = scalar_lea.vmem %s1, %s177
      %p179 = pneg %p83
      %p180 = pneg %p80
      %p181 = pneg %p111
      %p182 = pneg %p108
      %s183 = smul.u32 32, %s18
      %p184 = scmp.lt.s32.totalorder %s183, 63
      %s185 = scalar_select %p184, %s183, 63
      %p186 = scmp.lt.s32.totalorder %s19, 0
      %s187 = scalar_select %p186, %s19, 0
      %s188 = sadd.s32 %s187, %s185
      %s189 = smul.addr %s188, 8
      %s190 = scalar_lea.vmem %s2, %s189
      %s191 = smul.u32 32, %s18
      %p192 = scmp.lt.s32.totalorder %s191, 63
      %s193 = scalar_select %p192, %s191, 63
      %p194 = scmp.lt.s32.totalorder %s20, 0
      %s195 = scalar_select %p194, %s20, 0
      %s196 = sadd.s32 %s195, %s193
      %s197 = smul.addr %s196, 8
      %s198 = scalar_lea.vmem %s0, %s197
      %s199 = smul.u32 32, %s18
      %s200 = smul.u32 4, %s20
      %p201 = scmp.lt.s32.totalorder %s200, 3
      %s202 = scalar_select %p201, %s200, 3
      %p203 = scmp.lt.s32.totalorder %s19, 0
      %s204 = scalar_select %p203, %s19, 0
      %s205 = sadd.s32 %s204, %s202
      %s206 = smul.addr %s205, 8
      %s207 = scalar_lea.vmem %s1, %s206
      %s208 = smul.u32 4, %s20
      %s209 = smul.u32 32, %s18
      %p210 = scmp.lt.s32.totalorder %s209, 63
      %s211 = scalar_select %p210, %s209, 63
      %p212 = scmp.lt.s32.totalorder %s19, 0
      %s213 = scalar_select %p212, %s19, 0
      %s214 = sadd.s32 %s213, %s211
      %s215 = smul.addr %s214, 8
      %s216 = scalar_lea.vmem %s2, %s215
      %s217 = smul.u32 32, %s18
      %p218 = scmp.eq.s32.totalorder %s20, 0
      // Predicated region
      $region29: #{tpu_custom_call.1} parent=27 // pred_check
        %p219 = pneg %p218
      $region30: #{tpu_custom_call.1} parent=27 // pred_check_branch
        %221 = sbr.rel (%p219) target = $region32
      $region31: #{tpu_custom_call.1} parent=27 // pred_region
        %vm222 = vcmask 785408
        %223 = vst.msk [vmem:[#allocation2] sm:$0xff] %vm222, 0.0
        %224 = vst.msk [vmem:[#allocation2 + $0x8] sm:$0xff] %vm222, 0.0
        %225 = vst.msk [vmem:[#allocation2 + $0x10] sm:$0xff] %vm222, 0.0
        %226 = vst.msk [vmem:[#allocation2 + $0x18] sm:$0xff] %vm222, 0.0
        %227 = vst.msk [vmem:[#allocation2 + $0x20] sm:$0xff] %vm222, 0.0
        %228 = vst.msk [vmem:[#allocation2 + $0x28] sm:$0xff] %vm222, 0.0
        %229 = vst.msk [vmem:[#allocation2 + $0x30] sm:$0xff] %vm222, 0.0
        %230 = vst.msk [vmem:[#allocation2 + $0x38] sm:$0xff] %vm222, 0.0
        %231 = vst.msk [vmem:[#allocation2 + $0x40] sm:$0xff] %vm222, 0.0
        %232 = vst.msk [vmem:[#allocation2 + $0x48] sm:$0xff] %vm222, 0.0
        %233 = vst.msk [vmem:[#allocation2 + $0x50] sm:$0xff] %vm222, 0.0
        %234 = vst.msk [vmem:[#allocation2 + $0x58] sm:$0xff] %vm222, 0.0
        %235 = vst.msk [vmem:[#allocation2 + $0x60] sm:$0xff] %vm222, 0.0
        %236 = vst.msk [vmem:[#allocation2 + $0x68] sm:$0xff] %vm222, 0.0
        %237 = vst.msk [vmem:[#allocation2 + $0x70] sm:$0xff] %vm222, 0.0
        %238 = vst.msk [vmem:[#allocation2 + $0x78] sm:$0xff] %vm222, 0.0
        %239 = vst.msk [vmem:[#allocation2 + $0x80] sm:$0xff] %vm222, 0.0
        %240 = vst.msk [vmem:[#allocation2 + $0x88] sm:$0xff] %vm222, 0.0
        %241 = vst.msk [vmem:[#allocation2 + $0x90] sm:$0xff] %vm222, 0.0
        %242 = vst.msk [vmem:[#allocation2 + $0x98] sm:$0xff] %vm222, 0.0
        %243 = vst.msk [vmem:[#allocation2 + $0xa0] sm:$0xff] %vm222, 0.0
        %244 = vst.msk [vmem:[#allocation2 + $0xa8] sm:$0xff] %vm222, 0.0
        %245 = vst.msk [vmem:[#allocation2 + $0xb0] sm:$0xff] %vm222, 0.0
        %246 = vst.msk [vmem:[#allocation2 + $0xb8] sm:$0xff] %vm222, 0.0
        %247 = vst.msk [vmem:[#allocation2 + $0xc0] sm:$0xff] %vm222, 0.0
        %248 = vst.msk [vmem:[#allocation2 + $0xc8] sm:$0xff] %vm222, 0.0
        %249 = vst.msk [vmem:[#allocation2 + $0xd0] sm:$0xff] %vm222, 0.0
        %250 = vst.msk [vmem:[#allocation2 + $0xd8] sm:$0xff] %vm222, 0.0
        %251 = vst.msk [vmem:[#allocation2 + $0xe0] sm:$0xff] %vm222, 0.0
        %252 = vst.msk [vmem:[#allocation2 + $0xe8] sm:$0xff] %vm222, 0.0
        %253 = vst.msk [vmem:[#allocation2 + $0xf0] sm:$0xff] %vm222, 0.0
        %254 = vst.msk [vmem:[#allocation2 + $0xf8] sm:$0xff] %vm222, 0.0
      $region32: #{tpu_custom_call.1} parent=27 // pred_fallthru
        _
      %v255 = vld [vmem:[#allocation2] sm:$0xff]
      %v256 = vld [vmem:[#allocation2 + $0x8] sm:$0xff]
      %v257 = vld [vmem:[#allocation2 + $0x10] sm:$0xff]
      %v258 = vld [vmem:[#allocation2 + $0x18] sm:$0xff]
      %v259 = vld [vmem:[#allocation2 + $0x20] sm:$0xff]
      %v260 = vld [vmem:[#allocation2 + $0x28] sm:$0xff]
      %v261 = vld [vmem:[#allocation2 + $0x30] sm:$0xff]
      %v262 = vld [vmem:[#allocation2 + $0x38] sm:$0xff]
      %v263 = vld [vmem:[#allocation2 + $0x40] sm:$0xff]
      %v264 = vld [vmem:[#allocation2 + $0x48] sm:$0xff]
      %v265 = vld [vmem:[#allocation2 + $0x50] sm:$0xff]
      %v266 = vld [vmem:[#allocation2 + $0x58] sm:$0xff]
      %v267 = vld [vmem:[#allocation2 + $0x60] sm:$0xff]
      %v268 = vld [vmem:[#allocation2 + $0x68] sm:$0xff]
      %v269 = vld [vmem:[#allocation2 + $0x70] sm:$0xff]
      %v270 = vld [vmem:[#allocation2 + $0x78] sm:$0xff]
      %v271 = vld [vmem:[#allocation2 + $0x80] sm:$0xff]
      %v272 = vld [vmem:[#allocation2 + $0x88] sm:$0xff]
      %v273 = vld [vmem:[#allocation2 + $0x90] sm:$0xff]
      %v274 = vld [vmem:[#allocation2 + $0x98] sm:$0xff]
      %v275 = vld [vmem:[#allocation2 + $0xa0] sm:$0xff]
      %v276 = vld [vmem:[#allocation2 + $0xa8] sm:$0xff]
      %v277 = vld [vmem:[#allocation2 + $0xb0] sm:$0xff]
      %v278 = vld [vmem:[#allocation2 + $0xb8] sm:$0xff]
      %v279 = vld [vmem:[#allocation2 + $0xc0] sm:$0xff]
      %v280 = vld [vmem:[#allocation2 + $0xc8] sm:$0xff]
      %v281 = vld [vmem:[#allocation2 + $0xd0] sm:$0xff]
      %v282 = vld [vmem:[#allocation2 + $0xd8] sm:$0xff]
      %v283 = vld [vmem:[#allocation2 + $0xe0] sm:$0xff]
      %v284 = vld [vmem:[#allocation2 + $0xe8] sm:$0xff]
      %v285 = vld [vmem:[#allocation2 + $0xf0] sm:$0xff]
      %v286 = vld [vmem:[#allocation2 + $0xf8] sm:$0xff]
      %v287 = vld [vmem:[%s198] sm:$0xff]
      %v288 = vld [vmem:[%s198 + $0x8] sm:$0xff]
      %v289 = vld [vmem:[%s198 + $0x10] sm:$0xff]
      %v290 = vld [vmem:[%s198 + $0x18] sm:$0xff]
      %v291 = vld [vmem:[%s198 + $0x20] sm:$0xff]
      %v292 = vld [vmem:[%s198 + $0x28] sm:$0xff]
      %v293 = vld [vmem:[%s198 + $0x30] sm:$0xff]
      %v294 = vld [vmem:[%s198 + $0x38] sm:$0xff]
      %v295 = vld [vmem:[%s198 + $0x40] sm:$0xff]
      %v296 = vld [vmem:[%s198 + $0x48] sm:$0xff]
      %v297 = vld [vmem:[%s198 + $0x50] sm:$0xff]
      %v298 = vld [vmem:[%s198 + $0x58] sm:$0xff]
      %v299 = vld [vmem:[%s198 + $0x60] sm:$0xff]
      %v300 = vld [vmem:[%s198 + $0x68] sm:$0xff]
      %v301 = vld [vmem:[%s198 + $0x70] sm:$0xff]
      %v302 = vld [vmem:[%s198 + $0x78] sm:$0xff]
      %v303 = vld [vmem:[%s198 + $0x80] sm:$0xff]
      %v304 = vld [vmem:[%s198 + $0x88] sm:$0xff]
      %v305 = vld [vmem:[%s198 + $0x90] sm:$0xff]
      %v306 = vld [vmem:[%s198 + $0x98] sm:$0xff]
      %v307 = vld [vmem:[%s198 + $0xa0] sm:$0xff]
      %v308 = vld [vmem:[%s198 + $0xa8] sm:$0xff]
      %v309 = vld [vmem:[%s198 + $0xb0] sm:$0xff]
      %v310 = vld [vmem:[%s198 + $0xb8] sm:$0xff]
      %v311 = vld [vmem:[%s198 + $0xc0] sm:$0xff]
      %v312 = vld [vmem:[%s198 + $0xc8] sm:$0xff]
      %v313 = vld [vmem:[%s198 + $0xd0] sm:$0xff]
      %v314 = vld [vmem:[%s198 + $0xd8] sm:$0xff]
      %v315 = vld [vmem:[%s198 + $0xe0] sm:$0xff]
      %v316 = vld [vmem:[%s198 + $0xe8] sm:$0xff]
      %v317 = vld [vmem:[%s198 + $0xf0] sm:$0xff]
      %v318 = vld [vmem:[%s198 + $0xf8] sm:$0xff]
      %v319 = vld [vmem:[%s207] sm:$0xff]
      %v320 = vld [vmem:[%s207 + $0x8] sm:$0xff]
      %v321 = vld [vmem:[%s207 + $0x10] sm:$0xff]
      %v322 = vld [vmem:[%s207 + $0x18] sm:$0xff]
      %vm323 = vcmask 261120
      %v325 = vsel %vm323, %v287, 0
      %v328 = vsel %vm323, %v288, 0
      %v331 = vsel %vm323, %v289, 0
      %v334 = vsel %vm323, %v290, 0
      %v337 = vsel %vm323, %v291, 0
      %v340 = vsel %vm323, %v292, 0
      %v343 = vsel %vm323, %v293, 0
      %v346 = vsel %vm323, %v294, 0
      %v349 = vsel %vm323, %v295, 0
      %v352 = vsel %vm323, %v296, 0
      %v355 = vsel %vm323, %v297, 0
      %v358 = vsel %vm323, %v298, 0
      %v361 = vsel %vm323, %v299, 0
      %v364 = vsel %vm323, %v300, 0
      %v367 = vsel %vm323, %v301, 0
      %v370 = vsel %vm323, %v302, 0
      %v373 = vsel %vm323, %v303, 0
      %v376 = vsel %vm323, %v304, 0
      %v379 = vsel %vm323, %v305, 0
      %v382 = vsel %vm323, %v306, 0
      %v385 = vsel %vm323, %v307, 0
      %v388 = vsel %vm323, %v308, 0
      %v391 = vsel %vm323, %v309, 0
      %v394 = vsel %vm323, %v310, 0
      %v397 = vsel %vm323, %v311, 0
      %v400 = vsel %vm323, %v312, 0
      %v403 = vsel %vm323, %v313, 0
      %v406 = vsel %vm323, %v314, 0
      %v409 = vsel %vm323, %v315, 0
      %v412 = vsel %vm323, %v316, 0
      %v415 = vsel %vm323, %v317, 0
      %v418 = vsel %vm323, %v318, 0
      %420 = vmatpush.msra.mxu0 0.0
      %421 = vmatpush.msra.mxu0 0.0
      %422 = vmatpush.msra.mxu0 0.0
      %423 = vmatpush.msra.mxu0 0.0
      %424 = vmatpush.msra.mxu0 0.0
      %425 = vmatpush.msra.mxu0 0.0
      %426 = vmatpush.msra.mxu0 0.0
      %427 = vmatpush.msra.mxu0 0.0
      %428 = vmatpush.msra.mxu0 0.0
      %429 = vmatpush.msra.mxu0 0.0
      %430 = vmatpush.msra.mxu0 0.0
      %431 = vmatpush.msra.mxu0 0.0
      %432 = vmatpush.msra.mxu0 %v322
      %433 = vmatpush.msra.mxu0 %v321
      %434 = vmatpush.msra.mxu0 %v320
      %435 = vmatpush.msra.mxu0 %v319
      %436 = vmatmul.f32.gmra.mxu0 %v325
      %v437 = vpop.f32.mrf.mxu0
      %v438 = vadd.f32 0.0, %v437
      %439 = vmatmul.f32.gmra.mxu0 %v328
      %v440 = vpop.f32.mrf.mxu0
      %v441 = vadd.f32 0.0, %v440
      %442 = vmatmul.f32.gmra.mxu0 %v331
      %v443 = vpop.f32.mrf.mxu0
      %v444 = vadd.f32 0.0, %v443
      %445 = vmatmul.f32.gmra.mxu0 %v334
      %v446 = vpop.f32.mrf.mxu0
      %v447 = vadd.f32 0.0, %v446
      %448 = vmatmul.f32.gmra.mxu0 %v337
      %v449 = vpop.f32.mrf.mxu0
      %v450 = vadd.f32 0.0, %v449
      %451 = vmatmul.f32.gmra.mxu0 %v340
      %v452 = vpop.f32.mrf.mxu0
      %v453 = vadd.f32 0.0, %v452
      %454 = vmatmul.f32.gmra.mxu0 %v343
      %v455 = vpop.f32.mrf.mxu0
      %v456 = vadd.f32 0.0, %v455
      %457 = vmatmul.f32.gmra.mxu0 %v346
      %v458 = vpop.f32.mrf.mxu0
      %v459 = vadd.f32 0.0, %v458
      %460 = vmatmul.f32.gmra.mxu0 %v349
      %v461 = vpop.f32.mrf.mxu0
      %v462 = vadd.f32 0.0, %v461
      %463 = vmatmul.f32.gmra.mxu0 %v352
      %v464 = vpop.f32.mrf.mxu0
      %v465 = vadd.f32 0.0, %v464
      %466 = vmatmul.f32.gmra.mxu0 %v355
      %v467 = vpop.f32.mrf.mxu0
      %v468 = vadd.f32 0.0, %v467
      %469 = vmatmul.f32.gmra.mxu0 %v358
      %v470 = vpop.f32.mrf.mxu0
      %v471 = vadd.f32 0.0, %v470
      %472 = vmatmul.f32.gmra.mxu0 %v361
      %v473 = vpop.f32.mrf.mxu0
      %v474 = vadd.f32 0.0, %v473
      %475 = vmatmul.f32.gmra.mxu0 %v364
      %v476 = vpop.f32.mrf.mxu0
      %v477 = vadd.f32 0.0, %v476
      %478 = vmatmul.f32.gmra.mxu0 %v367
      %v479 = vpop.f32.mrf.mxu0
      %v480 = vadd.f32 0.0, %v479
      %481 = vmatmul.f32.gmra.mxu0 %v370
      %v482 = vpop.f32.mrf.mxu0
      %v483 = vadd.f32 0.0, %v482
      %484 = vmatmul.f32.gmra.mxu0 %v373
      %v485 = vpop.f32.mrf.mxu0
      %v486 = vadd.f32 0.0, %v485
      %487 = vmatmul.f32.gmra.mxu0 %v376
      %v488 = vpop.f32.mrf.mxu0
      %v489 = vadd.f32 0.0, %v488
      %490 = vmatmul.f32.gmra.mxu0 %v379
      %v491 = vpop.f32.mrf.mxu0
      %v492 = vadd.f32 0.0, %v491
      %493 = vmatmul.f32.gmra.mxu0 %v382
      %v494 = vpop.f32.mrf.mxu0
      %v495 = vadd.f32 0.0, %v494
      %496 = vmatmul.f32.gmra.mxu0 %v385
      %v497 = vpop.f32.mrf.mxu0
      %v498 = vadd.f32 0.0, %v497
      %499 = vmatmul.f32.gmra.mxu0 %v388
      %v500 = vpop.f32.mrf.mxu0
      %v501 = vadd.f32 0.0, %v500
      %502 = vmatmul.f32.gmra.mxu0 %v391
      %v503 = vpop.f32.mrf.mxu0
      %v504 = vadd.f32 0.0, %v503
      %505 = vmatmul.f32.gmra.mxu0 %v394
      %v506 = vpop.f32.mrf.mxu0
      %v507 = vadd.f32 0.0, %v506
      %508 = vmatmul.f32.gmra.mxu0 %v397
      %v509 = vpop.f32.mrf.mxu0
      %v510 = vadd.f32 0.0, %v509
      %511 = vmatmul.f32.gmra.mxu0 %v400
      %v512 = vpop.f32.mrf.mxu0
      %v513 = vadd.f32 0.0, %v512
      %514 = vmatmul.f32.gmra.mxu0 %v403
      %v515 = vpop.f32.mrf.mxu0
      %v516 = vadd.f32 0.0, %v515
      %517 = vmatmul.f32.gmra.mxu0 %v406
      %v518 = vpop.f32.mrf.mxu0
      %v519 = vadd.f32 0.0, %v518
      %520 = vmatmul.f32.gmra.mxu0 %v409
      %v521 = vpop.f32.mrf.mxu0
      %v522 = vadd.f32 0.0, %v521
      %523 = vmatmul.f32.gmra.mxu0 %v412
      %v524 = vpop.f32.mrf.mxu0
      %v525 = vadd.f32 0.0, %v524
      %526 = vmatmul.f32.gmra.mxu0 %v415
      %v527 = vpop.f32.mrf.mxu0
      %v528 = vadd.f32 0.0, %v527
      %529 = vmatmul.f32.gmra.mxu0 %v418
      %v530 = vpop.f32.mrf.mxu0
      %v531 = vadd.f32 0.0, %v530
      %532 = vdwg.mxu0
      %v533 = vadd.f32 %v255, %v438
      %v534 = vadd.f32 %v256, %v441
      %v535 = vadd.f32 %v257, %v444
      %v536 = vadd.f32 %v258, %v447
      %v537 = vadd.f32 %v259, %v450
      %v538 = vadd.f32 %v260, %v453
      %v539 = vadd.f32 %v261, %v456
      %v540 = vadd.f32 %v262, %v459
      %v541 = vadd.f32 %v263, %v462
      %v542 = vadd.f32 %v264, %v465
      %v543 = vadd.f32 %v265, %v468
      %v544 = vadd.f32 %v266, %v471
      %v545 = vadd.f32 %v267, %v474
      %v546 = vadd.f32 %v268, %v477
      %v547 = vadd.f32 %v269, %v480
      %v548 = vadd.f32 %v270, %v483
      %v549 = vadd.f32 %v271, %v486
      %v550 = vadd.f32 %v272, %v489
      %v551 = vadd.f32 %v273, %v492
      %v552 = vadd.f32 %v274, %v495
      %v553 = vadd.f32 %v275, %v498
      %v554 = vadd.f32 %v276, %v501
      %v555 = vadd.f32 %v277, %v504
      %v556 = vadd.f32 %v278, %v507
      %v557 = vadd.f32 %v279, %v510
      %v558 = vadd.f32 %v280, %v513
      %v559 = vadd.f32 %v281, %v516
      %v560 = vadd.f32 %v282, %v519
      %v561 = vadd.f32 %v283, %v522
      %v562 = vadd.f32 %v284, %v525
      %v563 = vadd.f32 %v285, %v528
      %v564 = vadd.f32 %v286, %v531
      %vm565 = vcmask 785408
      %566 = vst.msk [vmem:[#allocation2] sm:$0xff] %vm565, %v533
      %567 = vst.msk [vmem:[#allocation2 + $0x8] sm:$0xff] %vm565, %v534
      %568 = vst.msk [vmem:[#allocation2 + $0x10] sm:$0xff] %vm565, %v535
      %569 = vst.msk [vmem:[#allocation2 + $0x18] sm:$0xff] %vm565, %v536
      %570 = vst.msk [vmem:[#allocation2 + $0x20] sm:$0xff] %vm565, %v537
      %571 = vst.msk [vmem:[#allocation2 + $0x28] sm:$0xff] %vm565, %v538
      %572 = vst.msk [vmem:[#allocation2 + $0x30] sm:$0xff] %vm565, %v539
      %573 = vst.msk [vmem:[#allocation2 + $0x38] sm:$0xff] %vm565, %v540
      %574 = vst.msk [vmem:[#allocation2 + $0x40] sm:$0xff] %vm565, %v541
      %575 = vst.msk [vmem:[#allocation2 + $0x48] sm:$0xff] %vm565, %v542
      %576 = vst.msk [vmem:[#allocation2 + $0x50] sm:$0xff] %vm565, %v543
      %577 = vst.msk [vmem:[#allocation2 + $0x58] sm:$0xff] %vm565, %v544
      %578 = vst.msk [vmem:[#allocation2 + $0x60] sm:$0xff] %vm565, %v545
      %579 = vst.msk [vmem:[#allocation2 + $0x68] sm:$0xff] %vm565, %v546
      %580 = vst.msk [vmem:[#allocation2 + $0x70] sm:$0xff] %vm565, %v547
      %581 = vst.msk [vmem:[#allocation2 + $0x78] sm:$0xff] %vm565, %v548
      %582 = vst.msk [vmem:[#allocation2 + $0x80] sm:$0xff] %vm565, %v549
      %583 = vst.msk [vmem:[#allocation2 + $0x88] sm:$0xff] %vm565, %v550
      %584 = vst.msk [vmem:[#allocation2 + $0x90] sm:$0xff] %vm565, %v551
      %585 = vst.msk [vmem:[#allocation2 + $0x98] sm:$0xff] %vm565, %v552
      %586 = vst.msk [vmem:[#allocation2 + $0xa0] sm:$0xff] %vm565, %v553
      %587 = vst.msk [vmem:[#allocation2 + $0xa8] sm:$0xff] %vm565, %v554
      %588 = vst.msk [vmem:[#allocation2 + $0xb0] sm:$0xff] %vm565, %v555
      %589 = vst.msk [vmem:[#allocation2 + $0xb8] sm:$0xff] %vm565, %v556
      %590 = vst.msk [vmem:[#allocation2 + $0xc0] sm:$0xff] %vm565, %v557
      %591 = vst.msk [vmem:[#allocation2 + $0xc8] sm:$0xff] %vm565, %v558
      %592 = vst.msk [vmem:[#allocation2 + $0xd0] sm:$0xff] %vm565, %v559
      %593 = vst.msk [vmem:[#allocation2 + $0xd8] sm:$0xff] %vm565, %v560
      %594 = vst.msk [vmem:[#allocation2 + $0xe0] sm:$0xff] %vm565, %v561
      %595 = vst.msk [vmem:[#allocation2 + $0xe8] sm:$0xff] %vm565, %v562
      %596 = vst.msk [vmem:[#allocation2 + $0xf0] sm:$0xff] %vm565, %v563
      %597 = vst.msk [vmem:[#allocation2 + $0xf8] sm:$0xff] %vm565, %v564
      // Predicated region
      $region33: #{tpu_custom_call.1} parent=27 // pred_check
        %p598 = pneg %p218
      $region34: #{tpu_custom_call.1} parent=27 // pred_check_branch
        %600 = sbr.rel (%p598) target = $region36
      $region35: #{tpu_custom_call.1} parent=27 // pred_region
        %v601 = vld [vmem:[#allocation2] sm:$0xff]
        %v602 = vld [vmem:[#allocation2 + $0x8] sm:$0xff]
        %v603 = vld [vmem:[#allocation2 + $0x10] sm:$0xff]
        %v604 = vld [vmem:[#allocation2 + $0x18] sm:$0xff]
        %v605 = vld [vmem:[#allocation2 + $0x20] sm:$0xff]
        %v606 = vld [vmem:[#allocation2 + $0x28] sm:$0xff]
        %v607 = vld [vmem:[#allocation2 + $0x30] sm:$0xff]
        %v608 = vld [vmem:[#allocation2 + $0x38] sm:$0xff]
        %v609 = vld [vmem:[#allocation2 + $0x40] sm:$0xff]
        %v610 = vld [vmem:[#allocation2 + $0x48] sm:$0xff]
        %v611 = vld [vmem:[#allocation2 + $0x50] sm:$0xff]
        %v612 = vld [vmem:[#allocation2 + $0x58] sm:$0xff]
        %v613 = vld [vmem:[#allocation2 + $0x60] sm:$0xff]
        %v614 = vld [vmem:[#allocation2 + $0x68] sm:$0xff]
        %v615 = vld [vmem:[#allocation2 + $0x70] sm:$0xff]
        %v616 = vld [vmem:[#allocation2 + $0x78] sm:$0xff]
        %v617 = vld [vmem:[#allocation2 + $0x80] sm:$0xff]
        %v618 = vld [vmem:[#allocation2 + $0x88] sm:$0xff]
        %v619 = vld [vmem:[#allocation2 + $0x90] sm:$0xff]
        %v620 = vld [vmem:[#allocation2 + $0x98] sm:$0xff]
        %v621 = vld [vmem:[#allocation2 + $0xa0] sm:$0xff]
        %v622 = vld [vmem:[#allocation2 + $0xa8] sm:$0xff]
        %v623 = vld [vmem:[#allocation2 + $0xb0] sm:$0xff]
        %v624 = vld [vmem:[#allocation2 + $0xb8] sm:$0xff]
        %v625 = vld [vmem:[#allocation2 + $0xc0] sm:$0xff]
        %v626 = vld [vmem:[#allocation2 + $0xc8] sm:$0xff]
        %v627 = vld [vmem:[#allocation2 + $0xd0] sm:$0xff]
        %v628 = vld [vmem:[#allocation2 + $0xd8] sm:$0xff]
        %v629 = vld [vmem:[#allocation2 + $0xe0] sm:$0xff]
        %v630 = vld [vmem:[#allocation2 + $0xe8] sm:$0xff]
        %v631 = vld [vmem:[#allocation2 + $0xf0] sm:$0xff]
        %v632 = vld [vmem:[#allocation2 + $0xf8] sm:$0xff]
        %633 = vst.msk [vmem:[%s216] sm:$0xff] %vm565, %v601
        %634 = vst.msk [vmem:[%s216 + $0x8] sm:$0xff] %vm565, %v602
        %635 = vst.msk [vmem:[%s216 + $0x10] sm:$0xff] %vm565, %v603
        %636 = vst.msk [vmem:[%s216 + $0x18] sm:$0xff] %vm565, %v604
        %637 = vst.msk [vmem:[%s216 + $0x20] sm:$0xff] %vm565, %v605
        %638 = vst.msk [vmem:[%s216 + $0x28] sm:$0xff] %vm565, %v606
        %639 = vst.msk [vmem:[%s216 + $0x30] sm:$0xff] %vm565, %v607
        %640 = vst.msk [vmem:[%s216 + $0x38] sm:$0xff] %vm565, %v608
        %641 = vst.msk [vmem:[%s216 + $0x40] sm:$0xff] %vm565, %v609
        %642 = vst.msk [vmem:[%s216 + $0x48] sm:$0xff] %vm565, %v610
        %643 = vst.msk [vmem:[%s216 + $0x50] sm:$0xff] %vm565, %v611
        %644 = vst.msk [vmem:[%s216 + $0x58] sm:$0xff] %vm565, %v612
        %645 = vst.msk [vmem:[%s216 + $0x60] sm:$0xff] %vm565, %v613
        %646 = vst.msk [vmem:[%s216 + $0x68] sm:$0xff] %vm565, %v614
        %647 = vst.msk [vmem:[%s216 + $0x70] sm:$0xff] %vm565, %v615
        %648 = vst.msk [vmem:[%s216 + $0x78] sm:$0xff] %vm565, %v616
        %649 = vst.msk [vmem:[%s216 + $0x80] sm:$0xff] %vm565, %v617
        %650 = vst.msk [vmem:[%s216 + $0x88] sm:$0xff] %vm565, %v618
        %651 = vst.msk [vmem:[%s216 + $0x90] sm:$0xff] %vm565, %v619
        %652 = vst.msk [vmem:[%s216 + $0x98] sm:$0xff] %vm565, %v620
        %653 = vst.msk [vmem:[%s216 + $0xa0] sm:$0xff] %vm565, %v621
        %654 = vst.msk [vmem:[%s216 + $0xa8] sm:$0xff] %vm565, %v622
        %655 = vst.msk [vmem:[%s216 + $0xb0] sm:$0xff] %vm565, %v623
        %656 = vst.msk [vmem:[%s216 + $0xb8] sm:$0xff] %vm565, %v624
        %657 = vst.msk [vmem:[%s216 + $0xc0] sm:$0xff] %vm565, %v625
        %658 = vst.msk [vmem:[%s216 + $0xc8] sm:$0xff] %vm565, %v626
        %659 = vst.msk [vmem:[%s216 + $0xd0] sm:$0xff] %vm565, %v627
        %660 = vst.msk [vmem:[%s216 + $0xd8] sm:$0xff] %vm565, %v628
        %661 = vst.msk [vmem:[%s216 + $0xe0] sm:$0xff] %vm565, %v629
        %662 = vst.msk [vmem:[%s216 + $0xe8] sm:$0xff] %vm565, %v630
        %663 = vst.msk [vmem:[%s216 + $0xf0] sm:$0xff] %vm565, %v631
        %664 = vst.msk [vmem:[%s216 + $0xf8] sm:$0xff] %vm565, %v632
      $region36: #{tpu_custom_call.1} parent=27 // pred_fallthru
        _
      %s665 = smul.u32 32, %s18
      %p666 = scmp.lt.s32.totalorder %s665, 63
      %s667 = scalar_select %p666, %s665, 63
      %p668 = scmp.lt.s32.totalorder %s19, 0
      %s669 = scalar_select %p668, %s19, 0
      %s670 = sadd.s32 %s669, %s667
      %s671 = smul.addr %s670, 8
      %s672 = scalar_lea.vmem %s2, %s671
      // Predicated region
      $region37: #{tpu_custom_call.1} parent=27 // pred_check
        %p673 = pneg %p108
      $region38: #{tpu_custom_call.1} parent=27 // pred_check_branch
        %675 = sbr.rel (%p673) target = $region40
      $region39: #{tpu_custom_call.1} parent=27 // pred_region
        %s676 = smul.u32 32, %s18
      $region40: #{tpu_custom_call.1} parent=27 // pred_fallthru
        _
    $region28: #{tpu_custom_call.1} parent=5 // pred_fallthru
      _
    %p677 = scmp.le.s32.totalorder 2, %s8
    // Predicated region
    $region41: #{tpu_custom_call.1} parent=5 // pred_check
      %p678 = pneg %p677
    $region42: #{tpu_custom_call.1} parent=5 // pred_check_branch
      %680 = sbr.rel (%p678) target = $region44
    $region43: #{tpu_custom_call.1} parent=5 // pred_region
      %s681 = ssub.s32 %s8, 2
      // Predicated region
      $region45: #{tpu_custom_call.1} parent=43 // pred_check
        %p682 = pneg %p114
      $region46: #{tpu_custom_call.1} parent=43 // pred_check_branch
        %684 = sbr.rel (%p682) target = $region48
      $region47: #{tpu_custom_call.1} parent=43 // pred_region
        %s685 = smul.u32 32, %s21
        %p686 = scmp.lt.s32.totalorder %s685, 63
        %s687 = scalar_select %p686, %s685, 63
        %p688 = scmp.lt.s32.totalorder %s22, 0
        %s689 = scalar_select %p688, %s22, 0
        %s690 = sadd.s32 %s689, %s687
        %s691 = smul.addr %s690, 8
        %s692 = scalar_lea.vmem %s2, %s691
      $region48: #{tpu_custom_call.1} parent=43 // pred_fallthru
        _
    $region44: #{tpu_custom_call.1} parent=5 // pred_fallthru
      _
  $region6: #{tpu_custom_call.1} parent=0 // loop_footer
    %s12 = sadd.s32 1, %s8
  $region7: #{tpu_custom_call.1} parent=0 // loop_footer_branch
    %7 = sbr.rel target = $region3
  $region8: #{tpu_custom_call.1} parent=0 // loop_exit
    _

</llo_original>
